<compile_context>
chip_gen: v7x
topology: tpu7x:2x2x1
jax: 0.10.0
libtpu: 0.0.40
codegen_flags: <defaults>
</compile_context>

<pallas_src>
import functools
import math

import jax
import jax.numpy as jnp
from jax import lax
from jax.experimental import pallas as pl
from jax.experimental.pallas import tpu as pltpu

_INV_SQRT2 = 0.7071067811865476
_TWO_OVER_SQRT_PI = 1.1283791670955126


def _cell_centered_flat_coords(height: int, width: int) -> jnp.ndarray:
    """[S, 2] cell-center coordinates on the unit square, S = height * width."""
    ys = (jnp.arange(height, dtype=jnp.float32) + 0.5) / height
    xs = (jnp.arange(width, dtype=jnp.float32) + 0.5) / width
    gy, gx = jnp.meshgrid(ys, xs, indexing="ij")          # each [H, W]
    return jnp.stack([gy, gx], axis=-1).reshape(height * width, 2)


def _cpb_kernel(at8_ref, ct_ref, w2_ref, out_ref, *, approx_gelu: bool):
    """One (TM query rows) x (TK key cols) tile of the bias table.

    at8_ref : [TM//8, hid, 8]  query-side proj+bias, pre-transposed per 8-row group,
                               pre-scaled by 1/sqrt(2)                         (VMEM)
    ct_ref  : [hid, TK]        key-side proj, transposed, pre-scaled by 1/sqrt(2)
    w2_ref  : [nh_pad, hid]    second Linear weights, zero-padded rows, * 1/sqrt(2)
    out_ref : [TM, nh, TK]     bias tile, query rows on the leading axis
    """
    n_groups = at8_ref.shape[0]
    nh = out_ref.shape[1]

    @pl.loop(0, n_groups)
    def _(grp):
        at_grp = at8_ref[grp]                              # [hid, 8]
        base = grp * 8
        for r in range(8):                                 # static unroll: 8 query rows
            # y = (a[p] - c[q]) / sqrt(2); hidden on sublanes, keys on lanes. One VPU sub.
            y = at_grp[:, r:r + 1] - ct_ref[...]           # [hid, TK]
            if approx_gelu:
                # tanh GELU (EUP) with the 0.5 / 1/sqrt(2) factors folded into inputs/w2.
                inner = _TWO_OVER_SQRT_PI * (y + 0.08943 * (y * y * y))
                g = y * (1.0 + jnp.tanh(inner))
            else:
                g = y * (1.0 + lax.erf(y))                 # exact-erf GELU (PyTorch default)
            # hidden -> num_heads contraction on the (otherwise idle) MXU.
            res = jnp.dot(w2_ref[...], g,
                          preferred_element_type=jnp.float32)   # [nh_pad, TK]
            out_ref[base + r] = res[:nh].astype(out_ref.dtype)


def _pick_tile(n: int, target: int, align: int) -> int:
    """Largest divisor of n that is a multiple of `align` and <= target; else n (full)."""
    best = 0
    t = align
    limit = min(target, n)
    while t <= limit:
        if n % t == 0:
            best = t
        t += align
    return best if best else n


def fixed_cpb_2d(height, width, w1, b1, w2, *, tile_m=None, tile_k=None,
                 approx_gelu=False):
    """Pallas implementation of FixedCPB2d.forward(height, width).

    Args:
      w1: [hidden, 2]   (PyTorch Linear weight layout, out x in)
      b1: [hidden]
      w2: [num_heads, hidden]
    Returns:
      [1, num_heads, S, S] float32, S = height * width
    """
    S = height * width
    hid = w1.shape[0]
    nh = w2.shape[0]

    # Hoist the 2->hidden Linear out of the pairwise computation; fold the GELU
    # 1/sqrt(2) (and, via w2, the 0.5) constants into these tiny wrapper-side arrays.
    flat = _cell_centered_flat_coords(height, width)                  # [S, 2]
    proj = flat @ jnp.asarray(w1, jnp.float32).T                      # [S, hid]
    a = (proj + jnp.asarray(b1, jnp.float32)[None, :]) * _INV_SQRT2   # [S, hid]  query side
    ct = proj.T * _INV_SQRT2                                          # [hid, S]  key side
    nh_pad = ((nh + 7) // 8) * 8                                      # MXU-friendly LHS rows
    w2s = jnp.zeros((nh_pad, hid), jnp.float32).at[:nh].set(
        jnp.asarray(w2, jnp.float32) * _INV_SQRT2)                    # [nh_pad, hid]

    # Query rows are processed in groups of 8; pad the query axis up to a multiple of 8.
    s_pad = ((S + 7) // 8) * 8
    if tile_m is None:
        tile_m = _pick_tile(s_pad, min(256, max(8, s_pad // 2)), 8)
    if tile_k is None:
        tile_k = _pick_tile(S, 512, 128)
    assert s_pad % tile_m == 0 and tile_m % 8 == 0 and S % tile_k == 0, (S, tile_m, tile_k)

    a_pad = jnp.pad(a, ((0, s_pad - S), (0, 0))) if s_pad != S else a
    # [S/8, hid, 8]: per 8-row group, hidden on sublanes and the 8 row indices on lanes,
    # so the kernel's per-row column extraction is a static lane slice (no transposes).
    at8 = a_pad.reshape(s_pad // 8, 8, hid).transpose(0, 2, 1)

    grid = (s_pad // tile_m, S // tile_k)
    kernel = functools.partial(_cpb_kernel, approx_gelu=approx_gelu)

    out = pl.pallas_call(
        kernel,
        out_shape=jax.ShapeDtypeStruct((s_pad, nh, S), jnp.float32),
        grid_spec=pltpu.PrefetchScalarGridSpec(
            num_scalar_prefetch=0,
            grid=grid,
            in_specs=[
                pl.BlockSpec((tile_m // 8, hid, 8), lambda i, j: (i, 0, 0)),  # query groups
                pl.BlockSpec((hid, tile_k), lambda i, j: (0, j)),             # key columns
                pl.BlockSpec((nh_pad, hid), lambda i, j: (0, 0)),             # head weights
            ],
            out_specs=pl.BlockSpec((tile_m, nh, tile_k), lambda i, j: (i, 0, j)),
        ),
        compiler_params=pltpu.CompilerParams(
            dimension_semantics=("parallel", "parallel"),
            vmem_limit_bytes=32 * 1024 * 1024,     # v7x-safe (64 MiB physical VMEM)
        ),
    )(at8, ct, w2s)

    # [S_pad, nh, S] -> [1, nh, S, S]; drop query padding; HBM-bandwidth-only permute.
    return jnp.transpose(out[:S], (1, 0, 2))[None]


def _ref_forward(height, width, w1, b1, w2):
    """Plain-JAX reference mirroring the PyTorch module."""
    flat = _cell_centered_flat_coords(height, width)                  # [S, 2]
    diff = flat[:, None, :] - flat[None, :, :]                        # [S, S, 2]
    h = jax.nn.gelu(diff @ w1.T + b1, approximate=False)              # [S, S, hid]
    pos = h @ w2.T                                                    # [S, S, nh]
    return jnp.transpose(pos, (2, 0, 1))[None]


if __name__ == "__main__":
    hidden_size, num_heads = 32, 4
    height, width = 8, 8                                              # S = 64

    key = jax.random.PRNGKey(0)
    k1, k2, k3 = jax.random.split(key, 3)
    # Deterministic init mimicking PyTorch nn.Linear default U(-1/sqrt(fan_in), 1/sqrt(fan_in))
    bound1 = 1.0 / math.sqrt(2.0)
    bound2 = 1.0 / math.sqrt(hidden_size)
    w1 = jax.random.uniform(k1, (hidden_size, 2), jnp.float32, -bound1, bound1)
    b1 = jax.random.uniform(k2, (hidden_size,), jnp.float32, -bound1, bound1)
    w2 = jax.random.uniform(k3, (num_heads, hidden_size), jnp.float32, -bound2, bound2)

    out = fixed_cpb_2d(height, width, w1, b1, w2)
    out = jax.block_until_ready(out)

    S = height * width
    assert out.shape == (1, num_heads, S, S), out.shape
    ref = _ref_forward(height, width, w1, b1, w2)
    max_err = float(jnp.abs(out - ref).max())
    assert max_err < 1e-4, f"max_err={max_err}"

    print("KERNEL_OK")
</pallas_src>

<mosaic_0001>
module attributes {stable_mosaic.version = 11 : i64} {
  func.func @_cpb_kernel(%arg0: i32, %arg1: i32, %arg2: memref<4x32x8xf32, #tpu.memory_space<vmem>>, %arg3: memref<32x64xf32, #tpu.memory_space<vmem>>, %arg4: memref<8x32xf32, #tpu.memory_space<vmem>>, %arg5: memref<32x4x64xf32, #tpu.memory_space<vmem>>) attributes {dimension_semantics = [#tpu.dimension_semantics<parallel>, #tpu.dimension_semantics<parallel>], iteration_bounds = array<i64: 2, 1>, scalar_prefetch = 0 : i64, scratch_operands = 0 : i64, tpu.core_type = #tpu.core_type<tc>, window_params = [{transform_indices = @transform_0, window_bounds = array<i64: 4, 32, 8>}, {transform_indices = @transform_1, window_bounds = array<i64: 32, 64>}, {pipeline_mode = #tpu.pipeline_mode<synchronous>, transform_indices = @transform_2, window_bounds = array<i64: 8, 32>}, {transform_indices = @transform_3, window_bounds = array<i64: 32, 4, 64>}]} {
    %c0_i32 = arith.constant 0 : i32
    %c4_i32 = arith.constant 4 : i32
    %0 = arith.addi %c0_i32, %c4_i32 : i32
    %c1_i32 = arith.constant 1 : i32
    scf.for %arg6 = %c0_i32 to %0 step %c1_i32  : i32 {
      %c1_i32_1 = arith.constant 1 : i32
      %1 = arith.muli %arg6, %c1_i32_1 : i32
      %c0_i32_2 = arith.constant 0 : i32
      %2 = arith.addi %c0_i32_2, %1 : i32
      %3 = arith.index_cast %2 : i32 to index
      %c0 = arith.constant 0 : index
      %c0_3 = arith.constant 0 : index
      %4 = vector.load %arg2[%3, %c0, %c0_3] : memref<4x32x8xf32, #tpu.memory_space<vmem>>, vector<1x32x8xf32>
      %5 = vector.shape_cast %4 : vector<1x32x8xf32> to vector<32x8xf32>
      %c8_i32 = arith.constant 8 : i32
      %6 = arith.muli %2, %c8_i32 : i32
      %7 = vector.extract_strided_slice %5 {offsets = [0, 0], sizes = [32, 1], strides = [1, 1]} : vector<32x8xf32> to vector<32x1xf32>
      %c0_4 = arith.constant 0 : index
      %c0_5 = arith.constant 0 : index
      %8 = vector.load %arg3[%c0_4, %c0_5] : memref<32x64xf32, #tpu.memory_space<vmem>>, vector<32x64xf32>
      %9 = vector.broadcast %7 : vector<32x1xf32> to vector<32x64xf32>
      %10 = arith.subf %9, %8 : vector<32x64xf32>
      %11 = math.erf %10 : vector<32x64xf32>
      %cst = arith.constant 1.000000e+00 : f32
      %12 = vector.broadcast %cst : f32 to vector<32x64xf32>
      %13 = arith.addf %12, %11 : vector<32x64xf32>
      %14 = arith.mulf %10, %13 : vector<32x64xf32>
      %c0_6 = arith.constant 0 : index
      %c0_7 = arith.constant 0 : index
      %15 = vector.load %arg4[%c0_6, %c0_7] : memref<8x32xf32, #tpu.memory_space<vmem>>, vector<8x32xf32>
      %cst_8 = arith.constant dense<0.000000e+00> : vector<8x64xf32>
      %16 = tpu.matmul %15, %14, %cst_8 {dimension_numbers = #tpu.dot_dimension_numbers<[1], [0], [0], [1], [0, 0, 1, 1], [], []>} : vector<8x32xf32>, vector<32x64xf32>, vector<8x64xf32> -> vector<8x64xf32>
      %17 = vector.extract_strided_slice %16 {offsets = [0, 0], sizes = [4, 64], strides = [1, 1]} : vector<8x64xf32> to vector<4x64xf32>
      %c0_i32_9 = arith.constant 0 : i32
      %18 = arith.addi %6, %c0_i32_9 : i32
      %19 = arith.index_cast %18 : i32 to index
      %c0_10 = arith.constant 0 : index
      %c0_11 = arith.constant 0 : index
      %20 = vector.load %arg5[%19, %c0_10, %c0_11] : memref<32x4x64xf32, #tpu.memory_space<vmem>>, vector<1x4x64xf32>
      %21 = vector.shape_cast %20 : vector<1x4x64xf32> to vector<4x64xf32>
      %22 = vector.shape_cast %17 : vector<4x64xf32> to vector<1x4x64xf32>
      tpu.vector_store %arg5[%19, %c0_10, %c0_11], %22 {strides = array<i32>} : memref<32x4x64xf32, #tpu.memory_space<vmem>>, vector<1x4x64xf32>,
      %23 = vector.extract_strided_slice %5 {offsets = [0, 1], sizes = [32, 1], strides = [1, 1]} : vector<32x8xf32> to vector<32x1xf32>
      %c0_12 = arith.constant 0 : index
      %c0_13 = arith.constant 0 : index
      %24 = vector.load %arg3[%c0_12, %c0_13] : memref<32x64xf32, #tpu.memory_space<vmem>>, vector<32x64xf32>
      %25 = vector.broadcast %23 : vector<32x1xf32> to vector<32x64xf32>
      %26 = arith.subf %25, %24 : vector<32x64xf32>
      %27 = math.erf %26 : vector<32x64xf32>
      %cst_14 = arith.constant 1.000000e+00 : f32
      %28 = vector.broadcast %cst_14 : f32 to vector<32x64xf32>
      %29 = arith.addf %28, %27 : vector<32x64xf32>
      %30 = arith.mulf %26, %29 : vector<32x64xf32>
      %c0_15 = arith.constant 0 : index
      %c0_16 = arith.constant 0 : index
      %31 = vector.load %arg4[%c0_15, %c0_16] : memref<8x32xf32, #tpu.memory_space<vmem>>, vector<8x32xf32>
      %cst_17 = arith.constant dense<0.000000e+00> : vector<8x64xf32>
      %32 = tpu.matmul %31, %30, %cst_17 {dimension_numbers = #tpu.dot_dimension_numbers<[1], [0], [0], [1], [0, 0, 1, 1], [], []>} : vector<8x32xf32>, vector<32x64xf32>, vector<8x64xf32> -> vector<8x64xf32>
      %33 = vector.extract_strided_slice %32 {offsets = [0, 0], sizes = [4, 64], strides = [1, 1]} : vector<8x64xf32> to vector<4x64xf32>
      %c1_i32_18 = arith.constant 1 : i32
      %34 = arith.addi %6, %c1_i32_18 : i32
      %35 = arith.index_cast %34 : i32 to index
      %c0_19 = arith.constant 0 : index
      %c0_20 = arith.constant 0 : index
      %36 = vector.load %arg5[%35, %c0_19, %c0_20] : memref<32x4x64xf32, #tpu.memory_space<vmem>>, vector<1x4x64xf32>
      %37 = vector.shape_cast %36 : vector<1x4x64xf32> to vector<4x64xf32>
      %38 = vector.shape_cast %33 : vector<4x64xf32> to vector<1x4x64xf32>
      tpu.vector_store %arg5[%35, %c0_19, %c0_20], %38 {strides = array<i32>} : memref<32x4x64xf32, #tpu.memory_space<vmem>>, vector<1x4x64xf32>,
      %39 = vector.extract_strided_slice %5 {offsets = [0, 2], sizes = [32, 1], strides = [1, 1]} : vector<32x8xf32> to vector<32x1xf32>
      %c0_21 = arith.constant 0 : index
      %c0_22 = arith.constant 0 : index
      %40 = vector.load %arg3[%c0_21, %c0_22] : memref<32x64xf32, #tpu.memory_space<vmem>>, vector<32x64xf32>
      %41 = vector.broadcast %39 : vector<32x1xf32> to vector<32x64xf32>
      %42 = arith.subf %41, %40 : vector<32x64xf32>
      %43 = math.erf %42 : vector<32x64xf32>
      %cst_23 = arith.constant 1.000000e+00 : f32
      %44 = vector.broadcast %cst_23 : f32 to vector<32x64xf32>
      %45 = arith.addf %44, %43 : vector<32x64xf32>
      %46 = arith.mulf %42, %45 : vector<32x64xf32>
      %c0_24 = arith.constant 0 : index
      %c0_25 = arith.constant 0 : index
      %47 = vector.load %arg4[%c0_24, %c0_25] : memref<8x32xf32, #tpu.memory_space<vmem>>, vector<8x32xf32>
      %cst_26 = arith.constant dense<0.000000e+00> : vector<8x64xf32>
      %48 = tpu.matmul %47, %46, %cst_26 {dimension_numbers = #tpu.dot_dimension_numbers<[1], [0], [0], [1], [0, 0, 1, 1], [], []>} : vector<8x32xf32>, vector<32x64xf32>, vector<8x64xf32> -> vector<8x64xf32>
      %49 = vector.extract_strided_slice %48 {offsets = [0, 0], sizes = [4, 64], strides = [1, 1]} : vector<8x64xf32> to vector<4x64xf32>
      %c2_i32 = arith.constant 2 : i32
      %50 = arith.addi %6, %c2_i32 : i32
      %51 = arith.index_cast %50 : i32 to index
      %c0_27 = arith.constant 0 : index
      %c0_28 = arith.constant 0 : index
      %52 = vector.load %arg5[%51, %c0_27, %c0_28] : memref<32x4x64xf32, #tpu.memory_space<vmem>>, vector<1x4x64xf32>
      %53 = vector.shape_cast %52 : vector<1x4x64xf32> to vector<4x64xf32>
      %54 = vector.shape_cast %49 : vector<4x64xf32> to vector<1x4x64xf32>
      tpu.vector_store %arg5[%51, %c0_27, %c0_28], %54 {strides = array<i32>} : memref<32x4x64xf32, #tpu.memory_space<vmem>>, vector<1x4x64xf32>,
      %55 = vector.extract_strided_slice %5 {offsets = [0, 3], sizes = [32, 1], strides = [1, 1]} : vector<32x8xf32> to vector<32x1xf32>
      %c0_29 = arith.constant 0 : index
      %c0_30 = arith.constant 0 : index
      %56 = vector.load %arg3[%c0_29, %c0_30] : memref<32x64xf32, #tpu.memory_space<vmem>>, vector<32x64xf32>
      %57 = vector.broadcast %55 : vector<32x1xf32> to vector<32x64xf32>
      %58 = arith.subf %57, %56 : vector<32x64xf32>
      %59 = math.erf %58 : vector<32x64xf32>
      %cst_31 = arith.constant 1.000000e+00 : f32
      %60 = vector.broadcast %cst_31 : f32 to vector<32x64xf32>
      %61 = arith.addf %60, %59 : vector<32x64xf32>
      %62 = arith.mulf %58, %61 : vector<32x64xf32>
      %c0_32 = arith.constant 0 : index
      %c0_33 = arith.constant 0 : index
      %63 = vector.load %arg4[%c0_32, %c0_33] : memref<8x32xf32, #tpu.memory_space<vmem>>, vector<8x32xf32>
      %cst_34 = arith.constant dense<0.000000e+00> : vector<8x64xf32>
      %64 = tpu.matmul %63, %62, %cst_34 {dimension_numbers = #tpu.dot_dimension_numbers<[1], [0], [0], [1], [0, 0, 1, 1], [], []>} : vector<8x32xf32>, vector<32x64xf32>, vector<8x64xf32> -> vector<8x64xf32>
      %65 = vector.extract_strided_slice %64 {offsets = [0, 0], sizes = [4, 64], strides = [1, 1]} : vector<8x64xf32> to vector<4x64xf32>
      %c3_i32 = arith.constant 3 : i32
      %66 = arith.addi %6, %c3_i32 : i32
      %67 = arith.index_cast %66 : i32 to index
      %c0_35 = arith.constant 0 : index
      %c0_36 = arith.constant 0 : index
      %68 = vector.load %arg5[%67, %c0_35, %c0_36] : memref<32x4x64xf32, #tpu.memory_space<vmem>>, vector<1x4x64xf32>
      %69 = vector.shape_cast %68 : vector<1x4x64xf32> to vector<4x64xf32>
      %70 = vector.shape_cast %65 : vector<4x64xf32> to vector<1x4x64xf32>
      tpu.vector_store %arg5[%67, %c0_35, %c0_36], %70 {strides = array<i32>} : memref<32x4x64xf32, #tpu.memory_space<vmem>>, vector<1x4x64xf32>,
      %71 = vector.extract_strided_slice %5 {offsets = [0, 4], sizes = [32, 1], strides = [1, 1]} : vector<32x8xf32> to vector<32x1xf32>
      %c0_37 = arith.constant 0 : index
      %c0_38 = arith.constant 0 : index
      %72 = vector.load %arg3[%c0_37, %c0_38] : memref<32x64xf32, #tpu.memory_space<vmem>>, vector<32x64xf32>
      %73 = vector.broadcast %71 : vector<32x1xf32> to vector<32x64xf32>
      %74 = arith.subf %73, %72 : vector<32x64xf32>
      %75 = math.erf %74 : vector<32x64xf32>
      %cst_39 = arith.constant 1.000000e+00 : f32
      %76 = vector.broadcast %cst_39 : f32 to vector<32x64xf32>
      %77 = arith.addf %76, %75 : vector<32x64xf32>
      %78 = arith.mulf %74, %77 : vector<32x64xf32>
      %c0_40 = arith.constant 0 : index
      %c0_41 = arith.constant 0 : index
      %79 = vector.load %arg4[%c0_40, %c0_41] : memref<8x32xf32, #tpu.memory_space<vmem>>, vector<8x32xf32>
      %cst_42 = arith.constant dense<0.000000e+00> : vector<8x64xf32>
      %80 = tpu.matmul %79, %78, %cst_42 {dimension_numbers = #tpu.dot_dimension_numbers<[1], [0], [0], [1], [0, 0, 1, 1], [], []>} : vector<8x32xf32>, vector<32x64xf32>, vector<8x64xf32> -> vector<8x64xf32>
      %81 = vector.extract_strided_slice %80 {offsets = [0, 0], sizes = [4, 64], strides = [1, 1]} : vector<8x64xf32> to vector<4x64xf32>
      %c4_i32_43 = arith.constant 4 : i32
      %82 = arith.addi %6, %c4_i32_43 : i32
      %83 = arith.index_cast %82 : i32 to index
      %c0_44 = arith.constant 0 : index
      %c0_45 = arith.constant 0 : index
      %84 = vector.load %arg5[%83, %c0_44, %c0_45] : memref<32x4x64xf32, #tpu.memory_space<vmem>>, vector<1x4x64xf32>
      %85 = vector.shape_cast %84 : vector<1x4x64xf32> to vector<4x64xf32>
      %86 = vector.shape_cast %81 : vector<4x64xf32> to vector<1x4x64xf32>
      tpu.vector_store %arg5[%83, %c0_44, %c0_45], %86 {strides = array<i32>} : memref<32x4x64xf32, #tpu.memory_space<vmem>>, vector<1x4x64xf32>,
      %87 = vector.extract_strided_slice %5 {offsets = [0, 5], sizes = [32, 1], strides = [1, 1]} : vector<32x8xf32> to vector<32x1xf32>
      %c0_46 = arith.constant 0 : index
      %c0_47 = arith.constant 0 : index
      %88 = vector.load %arg3[%c0_46, %c0_47] : memref<32x64xf32, #tpu.memory_space<vmem>>, vector<32x64xf32>
      %89 = vector.broadcast %87 : vector<32x1xf32> to vector<32x64xf32>
      %90 = arith.subf %89, %88 : vector<32x64xf32>
      %91 = math.erf %90 : vector<32x64xf32>
      %cst_48 = arith.constant 1.000000e+00 : f32
      %92 = vector.broadcast %cst_48 : f32 to vector<32x64xf32>
      %93 = arith.addf %92, %91 : vector<32x64xf32>
      %94 = arith.mulf %90, %93 : vector<32x64xf32>
      %c0_49 = arith.constant 0 : index
      %c0_50 = arith.constant 0 : index
      %95 = vector.load %arg4[%c0_49, %c0_50] : memref<8x32xf32, #tpu.memory_space<vmem>>, vector<8x32xf32>
      %cst_51 = arith.constant dense<0.000000e+00> : vector<8x64xf32>
      %96 = tpu.matmul %95, %94, %cst_51 {dimension_numbers = #tpu.dot_dimension_numbers<[1], [0], [0], [1], [0, 0, 1, 1], [], []>} : vector<8x32xf32>, vector<32x64xf32>, vector<8x64xf32> -> vector<8x64xf32>
      %97 = vector.extract_strided_slice %96 {offsets = [0, 0], sizes = [4, 64], strides = [1, 1]} : vector<8x64xf32> to vector<4x64xf32>
      %c5_i32 = arith.constant 5 : i32
      %98 = arith.addi %6, %c5_i32 : i32
      %99 = arith.index_cast %98 : i32 to index
      %c0_52 = arith.constant 0 : index
      %c0_53 = arith.constant 0 : index
      %100 = vector.load %arg5[%99, %c0_52, %c0_53] : memref<32x4x64xf32, #tpu.memory_space<vmem>>, vector<1x4x64xf32>
      %101 = vector.shape_cast %100 : vector<1x4x64xf32> to vector<4x64xf32>
      %102 = vector.shape_cast %97 : vector<4x64xf32> to vector<1x4x64xf32>
      tpu.vector_store %arg5[%99, %c0_52, %c0_53], %102 {strides = array<i32>} : memref<32x4x64xf32, #tpu.memory_space<vmem>>, vector<1x4x64xf32>,
      %103 = vector.extract_strided_slice %5 {offsets = [0, 6], sizes = [32, 1], strides = [1, 1]} : vector<32x8xf32> to vector<32x1xf32>
      %c0_54 = arith.constant 0 : index
      %c0_55 = arith.constant 0 : index
      %104 = vector.load %arg3[%c0_54, %c0_55] : memref<32x64xf32, #tpu.memory_space<vmem>>, vector<32x64xf32>
      %105 = vector.broadcast %103 : vector<32x1xf32> to vector<32x64xf32>
      %106 = arith.subf %105, %104 : vector<32x64xf32>
      %107 = math.erf %106 : vector<32x64xf32>
      %cst_56 = arith.constant 1.000000e+00 : f32
      %108 = vector.broadcast %cst_56 : f32 to vector<32x64xf32>
      %109 = arith.addf %108, %107 : vector<32x64xf32>
      %110 = arith.mulf %106, %109 : vector<32x64xf32>
      %c0_57 = arith.constant 0 : index
      %c0_58 = arith.constant 0 : index
      %111 = vector.load %arg4[%c0_57, %c0_58] : memref<8x32xf32, #tpu.memory_space<vmem>>, vector<8x32xf32>
      %cst_59 = arith.constant dense<0.000000e+00> : vector<8x64xf32>
      %112 = tpu.matmul %111, %110, %cst_59 {dimension_numbers = #tpu.dot_dimension_numbers<[1], [0], [0], [1], [0, 0, 1, 1], [], []>} : vector<8x32xf32>, vector<32x64xf32>, vector<8x64xf32> -> vector<8x64xf32>
      %113 = vector.extract_strided_slice %112 {offsets = [0, 0], sizes = [4, 64], strides = [1, 1]} : vector<8x64xf32> to vector<4x64xf32>
      %c6_i32 = arith.constant 6 : i32
      %114 = arith.addi %6, %c6_i32 : i32
      %115 = arith.index_cast %114 : i32 to index
      %c0_60 = arith.constant 0 : index
      %c0_61 = arith.constant 0 : index
      %116 = vector.load %arg5[%115, %c0_60, %c0_61] : memref<32x4x64xf32, #tpu.memory_space<vmem>>, vector<1x4x64xf32>
      %117 = vector.shape_cast %116 : vector<1x4x64xf32> to vector<4x64xf32>
      %118 = vector.shape_cast %113 : vector<4x64xf32> to vector<1x4x64xf32>
      tpu.vector_store %arg5[%115, %c0_60, %c0_61], %118 {strides = array<i32>} : memref<32x4x64xf32, #tpu.memory_space<vmem>>, vector<1x4x64xf32>,
      %119 = vector.extract_strided_slice %5 {offsets = [0, 7], sizes = [32, 1], strides = [1, 1]} : vector<32x8xf32> to vector<32x1xf32>
      %c0_62 = arith.constant 0 : index
      %c0_63 = arith.constant 0 : index
      %120 = vector.load %arg3[%c0_62, %c0_63] : memref<32x64xf32, #tpu.memory_space<vmem>>, vector<32x64xf32>
      %121 = vector.broadcast %119 : vector<32x1xf32> to vector<32x64xf32>
      %122 = arith.subf %121, %120 : vector<32x64xf32>
      %123 = math.erf %122 : vector<32x64xf32>
      %cst_64 = arith.constant 1.000000e+00 : f32
      %124 = vector.broadcast %cst_64 : f32 to vector<32x64xf32>
      %125 = arith.addf %124, %123 : vector<32x64xf32>
      %126 = arith.mulf %122, %125 : vector<32x64xf32>
      %c0_65 = arith.constant 0 : index
      %c0_66 = arith.constant 0 : index
      %127 = vector.load %arg4[%c0_65, %c0_66] : memref<8x32xf32, #tpu.memory_space<vmem>>, vector<8x32xf32>
      %cst_67 = arith.constant dense<0.000000e+00> : vector<8x64xf32>
      %128 = tpu.matmul %127, %126, %cst_67 {dimension_numbers = #tpu.dot_dimension_numbers<[1], [0], [0], [1], [0, 0, 1, 1], [], []>} : vector<8x32xf32>, vector<32x64xf32>, vector<8x64xf32> -> vector<8x64xf32>
      %129 = vector.extract_strided_slice %128 {offsets = [0, 0], sizes = [4, 64], strides = [1, 1]} : vector<8x64xf32> to vector<4x64xf32>
      %c7_i32 = arith.constant 7 : i32
      %130 = arith.addi %6, %c7_i32 : i32
      %131 = arith.index_cast %130 : i32 to index
      %c0_68 = arith.constant 0 : index
      %c0_69 = arith.constant 0 : index
      %132 = vector.load %arg5[%131, %c0_68, %c0_69] : memref<32x4x64xf32, #tpu.memory_space<vmem>>, vector<1x4x64xf32>
      %133 = vector.shape_cast %132 : vector<1x4x64xf32> to vector<4x64xf32>
      %134 = vector.shape_cast %129 : vector<4x64xf32> to vector<1x4x64xf32>
      tpu.vector_store %arg5[%131, %c0_68, %c0_69], %134 {strides = array<i32>} : memref<32x4x64xf32, #tpu.memory_space<vmem>>, vector<1x4x64xf32>,
    }
    %c4_i32_0 = arith.constant 4 : i32
    return
  }
  func.func @transform_0(%arg0: i32, %arg1: i32) -> (i32, i32, i32) {
    %c0_i32 = arith.constant 0 : i32
    %c0_i32_0 = arith.constant 0 : i32
    %c0_i32_1 = arith.constant 0 : i32
    return %arg0, %c0_i32, %c0_i32_0 : i32, i32, i32
  }
  func.func @transform_1(%arg0: i32, %arg1: i32) -> (i32, i32) {
    %c0_i32 = arith.constant 0 : i32
    %c0_i32_0 = arith.constant 0 : i32
    return %c0_i32, %arg1 : i32, i32
  }
  func.func @transform_2(%arg0: i32, %arg1: i32) -> (i32, i32) {
    %c0_i32 = arith.constant 0 : i32
    %c0_i32_0 = arith.constant 0 : i32
    %c0_i32_1 = arith.constant 0 : i32
    return %c0_i32, %c0_i32_0 : i32, i32
  }
  func.func @transform_3(%arg0: i32, %arg1: i32) -> (i32, i32, i32) {
    %c0_i32 = arith.constant 0 : i32
    %c0_i32_0 = arith.constant 0 : i32
    return %arg0, %c0_i32, %arg1 : i32, i32, i32
  }
}

</mosaic_0001>

<llo_original>
// kernel: tpu_custom_call.1
$region0: #{tpu_custom_call.1}
  #allocation0 [shape = 'u32[]', space=smem, size = 0x4, offset = 0x4, fixed_abs, tag = 'smem constant byte address 0x4 - core index']
  #allocation1 [shape = 'u32[144,128]{1,0:T(1,128)}', space=vmem, size = 0x12000, scoped, tag = 'internal scratch']
  %s0 = inlined_call_operand.vmem [shape: f32[8,32,8], index: 0, kind: input, shape index: {}]
  %s1 = inlined_call_operand.vmem [shape: f32[32,64], index: 1, kind: input, shape index: {}]
  %s2 = inlined_call_operand.vmem [shape: f32[8,32], index: 2, kind: input, shape index: {}]
  %s3 = inlined_call_operand.hbm [shape: f32[64,4,64], index: 3, kind: output, shape index: {}]
  %s4 = sld [smem:[#allocation0]]
  $region52: #{tpu_custom_call.1} parent=0
    _
  %s6 = ssub.s32 1, %s4
  %s7 = scalar_select 0, %s6, %s4
  $region1: #{tpu_custom_call.1} parent=0
    #allocation2 [shape = 'u8[131072]{0}', space=vmem, size = 0x20000, scoped, tag = 'output window, operand 0']
    #allocation3 [shape = 's32[2]{0}', space=sflag, size = 0x8, scoped, tag = 'scoped memory for tpu_custom_call.1']
    %8 = vsyncpa [#allocation3], 0
    %s9 = scalar_lea.sflag [#allocation3], 1
    %10 = vsyncpa %s9, 0
    loop: start=0, step=1, limit=4
    $region2: #{tpu_custom_call.1} parent=1 // loop_pre_header
      _
    $region3: #{tpu_custom_call.1} parent=1 // loop_header
      %s12 = sphi 0, %s16
      %p13 = scmp.ge.s32.totalorder %s12, 4
      %s19 = sphi 0, %s31
      %s20 = sphi 0, %s27
      %s21 = sphi 0, %s19
      %s22 = sphi 0, %s20
      %s23 = sphi 0, %s21
      %s24 = sphi 0, %s22
      %s34 = sphi 0, %s36
      %s37 = sphi 0, %s34
      %s38 = sphi 0, %s37
      %s54 = sphi 0, %s38
      %s60 = sphi 0, %s62
      %s63 = sphi 0, %s60
      %s64 = sphi 0, %s63
      %s80 = sphi 0, %s64
      %s84 = sphi 0, %s84
      %s86 = sphi 0, %s84
      %s87 = sphi 0, %s86
      %s101 = sphi 0, %s87
      %s109 = sphi 0, %s111
      %s112 = sphi 0, %s109
      %s113 = sphi 0, %s112
      %s129 = sphi 0, %s113
    $region4: #{tpu_custom_call.1} parent=1 // loop_header_branch
      %15 = sbr.rel (%p13) target = $region8
    $region5: #{tpu_custom_call.1} parent=1 // loop_body
      %s17 = ssub.s32 %s12, 1
      %s18 = ssub.s32 %s12, 2
      %s25 = sadd.s32 1, %s20
      %p26 = scmp.ge.s32.totalorder %s25, 1
      %s27 = scalar_select %p26, 0, %s25
      %s28 = sadd.s32 1, %s19
      %s29 = scalar_select %p26, %s28, %s19
      %p30 = scmp.ge.s32.totalorder %s29, 2
      %s31 = scalar_select %p30, 0, %s29
      %s32 = ssub.s32 %s19, %s31
      %p33 = scmp.eq.s32.totalorder %s32, 0
      %s35 = sadd.s32 %s34, 1
      %s36 = scalar_select %p33, %s34, %s35
      %p39 = pneg %p33
      %p40 = scmp.eq.s32.totalorder %s12, 1
      %p41 = por %p39, %p40
      %p42 = scmp.ne.s32.totalorder %s34, %s37
      %p43 = scmp.eq.s32.totalorder %s12, 0
      %p44 = por %p42, %p43
      %p45 = scmp.ne.s32.totalorder %s34, %s37
      %p46 = scmp.eq.s32.totalorder %s17, 1
      %p47 = por %p45, %p46
      %p48 = scmp.ne.s32.totalorder %s37, %s38
      %p49 = scmp.eq.s32.totalorder %s17, 0
      %p50 = por %p48, %p49
      %p51 = scmp.ne.s32.totalorder %s37, %s38
      %p52 = scmp.eq.s32.totalorder %s18, 1
      %p53 = por %p51, %p52
      %p55 = scmp.ne.s32.totalorder %s38, %s54
      %p56 = scmp.eq.s32.totalorder %s18, 0
      %p57 = por %p55, %p56
      %s58 = ssub.s32 %s20, %s27
      %p59 = scmp.eq.s32.totalorder %s58, 0
      %s61 = sadd.s32 %s60, 1
      %s62 = scalar_select %p59, %s60, %s61
      %p65 = pneg %p59
      %p66 = scmp.eq.s32.totalorder %s12, 1
      %p67 = por %p65, %p66
      %p68 = scmp.ne.s32.totalorder %s60, %s63
      %p69 = scmp.eq.s32.totalorder %s12, 0
      %p70 = por %p68, %p69
      %p71 = scmp.ne.s32.totalorder %s60, %s63
      %p72 = scmp.eq.s32.totalorder %s17, 1
      %p73 = por %p71, %p72
      %p74 = scmp.ne.s32.totalorder %s63, %s64
      %p75 = scmp.eq.s32.totalorder %s17, 0
      %p76 = por %p74, %p75
      %p77 = scmp.ne.s32.totalorder %s63, %s64
      %p78 = scmp.eq.s32.totalorder %s18, 1
      %p79 = por %p77, %p78
      %p81 = scmp.ne.s32.totalorder %s64, %s80
      %p82 = scmp.eq.s32.totalorder %s18, 0
      %p83 = por %p81, %p82
      %s85 = sadd.s32 %s84, 1
      %p88 = scmp.eq.s32.totalorder %s12, 1
      %p89 = scmp.ne.s32.totalorder %s84, %s86
      %p90 = scmp.eq.s32.totalorder %s12, 0
      %p91 = por %p89, %p90
      %p92 = scmp.ne.s32.totalorder %s84, %s86
      %p93 = scmp.eq.s32.totalorder %s17, 1
      %p94 = por %p92, %p93
      %p95 = scmp.ne.s32.totalorder %s86, %s87
      %p96 = scmp.eq.s32.totalorder %s17, 0
      %p97 = por %p95, %p96
      %p98 = scmp.ne.s32.totalorder %s86, %s87
      %p99 = scmp.eq.s32.totalorder %s18, 1
      %p100 = por %p98, %p99
      %p102 = scmp.ne.s32.totalorder %s87, %s101
      %p103 = scmp.eq.s32.totalorder %s18, 0
      %p104 = por %p102, %p103
      %s105 = ssub.s32 %s19, %s31
      %s106 = ssub.s32 %s20, %s27
      %s107 = sor.u32 %s105, %s106
      %p108 = scmp.eq.s32.totalorder %s107, 0
      %s110 = sadd.s32 %s109, 1
      %s111 = scalar_select %p108, %s109, %s110
      %p114 = pneg %p108
      %p115 = scmp.eq.s32.totalorder %s12, 1
      %p116 = por %p114, %p115
      %p117 = scmp.ne.s32.totalorder %s109, %s112
      %p118 = scmp.eq.s32.totalorder %s12, 0
      %p119 = por %p117, %p118
      %p120 = scmp.ne.s32.totalorder %s109, %s112
      %p121 = scmp.eq.s32.totalorder %s17, 1
      %p122 = por %p120, %p121
      %p123 = scmp.ne.s32.totalorder %s112, %s113
      %p124 = scmp.eq.s32.totalorder %s17, 0
      %p125 = por %p123, %p124
      %p126 = scmp.ne.s32.totalorder %s112, %s113
      %p127 = scmp.eq.s32.totalorder %s18, 1
      %p128 = por %p126, %p127
      %p130 = scmp.ne.s32.totalorder %s113, %s129
      %p131 = scmp.eq.s32.totalorder %s18, 0
      %p132 = por %p130, %p131
      %p133 = scmp.le.s32.totalorder 1, %s12
      %p134 = scmp.lt.s32.totalorder %s12, 3
      %p135 = pnand %p133, %p134
      %p136 = pneg %p135
      // Predicated region
      $region9: #{tpu_custom_call.1} parent=5 // pred_check
        _
      $region10: #{tpu_custom_call.1} parent=5 // pred_check_branch
        %138 = sbr.rel (%p135) target = $region12
      $region11: #{tpu_custom_call.1} parent=5 // pred_region
        %s139 = ssub.s32 %s12, 1
        // Predicated region
        $region13: #{tpu_custom_call.1} parent=11 // pred_check
          %p140 = pneg %p76
        $region14: #{tpu_custom_call.1} parent=11 // pred_check_branch
          %142 = sbr.rel (%p140) target = $region16
        $region15: #{tpu_custom_call.1} parent=11 // pred_region
          %p143 = scmp.lt.s32.totalorder %s22, 0
          %s144 = scalar_select %p143, %s22, 0
          %s145 = smul.addr %s144, 8
          %s146 = scalar_lea.vmem %s1, %s145
        $region16: #{tpu_custom_call.1} parent=11 // pred_fallthru
          _
        // Predicated region
        $region17: #{tpu_custom_call.1} parent=11 // pred_check
          %p147 = pneg %p97
        $region18: #{tpu_custom_call.1} parent=11 // pred_check_branch
          %149 = sbr.rel (%p147) target = $region20
        $region19: #{tpu_custom_call.1} parent=11 // pred_region
          _
        $region20: #{tpu_custom_call.1} parent=11 // pred_fallthru
          _
      $region12: #{tpu_custom_call.1} parent=5 // pred_fallthru
        _
      %p150 = scmp.lt.s32.totalorder %s12, 2
      // Predicated region
      $region21: #{tpu_custom_call.1} parent=5 // pred_check
        %p151 = pneg %p150
      $region22: #{tpu_custom_call.1} parent=5 // pred_check_branch
        %153 = sbr.rel (%p151) target = $region24
      $region23: #{tpu_custom_call.1} parent=5 // pred_region
        // Predicated region
        $region25: #{tpu_custom_call.1} parent=23 // pred_check
          %p154 = pneg %p44
        $region26: #{tpu_custom_call.1} parent=23 // pred_check_branch
          %156 = sbr.rel (%p154) target = $region28
        $region27: #{tpu_custom_call.1} parent=23 // pred_region
          %s157 = smul.u32 4, %s19
          %p158 = scmp.lt.s32.totalorder %s157, 7
          %s159 = scalar_select %p158, %s157, 7
          %s160 = smul.addr %s159, 4
          %s161 = smul.addr %s160, 8
          %s162 = scalar_lea.vmem %s0, %s161
          %s163 = smul.u32 4, %s19
        $region28: #{tpu_custom_call.1} parent=23 // pred_fallthru
          _
      $region24: #{tpu_custom_call.1} parent=5 // pred_fallthru
        _
      %p164 = scmp.le.s32.totalorder 1, %s12
      %p165 = scmp.lt.s32.totalorder %s12, 3
      %p166 = pnand %p164, %p165
      %p167 = pneg %p166
      // Predicated region
      $region29: #{tpu_custom_call.1} parent=5 // pred_check
        _
      $region30: #{tpu_custom_call.1} parent=5 // pred_check_branch
        %169 = sbr.rel (%p166) target = $region32
      $region31: #{tpu_custom_call.1} parent=5 // pred_region
        %s170 = ssub.s32 %s12, 1
        %s171 = smul.u32 4, %s21
        %p172 = scmp.lt.s32.totalorder %s171, 7
        %s173 = scalar_select %p172, %s171, 7
        %s174 = smul.addr %s173, 4
        %s175 = smul.addr %s174, 8
        %s176 = scalar_lea.vmem %s0, %s175
        %p177 = pneg %p50
        %p178 = pneg %p47
        %p179 = scmp.lt.s32.totalorder %s22, 0
        %s180 = scalar_select %p179, %s22, 0
        %s181 = smul.addr %s180, 8
        %s182 = scalar_lea.vmem %s1, %s181
        %p183 = pneg %p76
        %p184 = pneg %p73
        %p185 = pneg %p97
        %p186 = pneg %p94
        %p187 = pneg %p125
        %p188 = pneg %p122
        %s189 = sand.u32 %s112, 1
        %s190 = scalar_lea.sflag [#allocation3], %s189
        %s191 = sand.u32 %s112, 1
        %s192 = smul.addr %s191, 128
        %s193 = scalar_lea.vmem [#allocation2], %s192
        %s194 = smul.u32 4, %s21
        %p195 = scmp.lt.s32.totalorder %s194, 7
        %s196 = scalar_select %p195, %s194, 7
        %s197 = smul.addr %s196, 4
        %s198 = smul.addr %s197, 8
        %s199 = scalar_lea.vmem %s0, %s198
        %s200 = smul.u32 4, %s21
        %p201 = scmp.lt.s32.totalorder %s22, 0
        %s202 = scalar_select %p201, %s22, 0
        %s203 = smul.addr %s202, 8
        %s204 = scalar_lea.vmem %s1, %s203
        %s205 = smul.u32 32, %s21
        loop: start=0, step=1, limit=4
        $region33: #{tpu_custom_call.1} parent=31 // loop_pre_header
          _
        $region34: #{tpu_custom_call.1} parent=31 // loop_header
          %s207 = sphi 0, %s211
          %p208 = scmp.ge.s32.totalorder %s207, 4
        $region35: #{tpu_custom_call.1} parent=31 // loop_header_branch
          %210 = sbr.rel (%p208) target = $region39
        $region36: #{tpu_custom_call.1} parent=31 // loop_body
          %s212 = smul.u32 %s207, 32
          %s213 = scalar_lea.vmem %s199, %s212
          %v214 = vld [vmem:[%s213] sm:$0xff]
          %v215 = vld [vmem:[%s213 + $0x8] sm:$0xff]
          %v216 = vld [vmem:[%s213 + $0x10] sm:$0xff]
          %v217 = vld [vmem:[%s213 + $0x18] sm:$0xff]
          %s218 = smul.u32 %s207, 8
          %v219 = vld [vmem:[%s204] sm:$0xff]
          %v220 = vld [vmem:[%s204 + $0x8] sm:$0xff]
          %v221 = vld [vmem:[%s204 + $0x10] sm:$0xff]
          %v222 = vld [vmem:[%s204 + $0x18] sm:$0xff]
          %224 = vset.pattern.permute.xlu0 0
          %225 = vperm.xlu0 %224, %v214
          %v226 = vpop.permute.xlu0 %225
          %229 = vset.pattern.permute.xlu0 0
          %230 = vperm.xlu0 %229, %v215
          %v231 = vpop.permute.xlu0 %230
          %234 = vset.pattern.permute.xlu0 0
          %235 = vperm.xlu0 %234, %v216
          %v236 = vpop.permute.xlu0 %235
          %239 = vset.pattern.permute.xlu0 0
          %240 = vperm.xlu0 %239, %v217
          %v241 = vpop.permute.xlu0 %240
          %v243 = vsub.f32 %v226, %v219
          %v244 = vsub.f32 %v231, %v220
          %v245 = vsub.f32 %v236, %v221
          %v246 = vsub.f32 %v241, %v222
          %v247 = verf.f32.pop %v243
          %v248 = verf.f32.pop %v244
          %v249 = verf.f32.pop %v245
          %v250 = verf.f32.pop %v246
          %v251 = vadd.f32 %v247, 1.0
          %v252 = vadd.f32 %v248, 1.0
          %v253 = vadd.f32 %v249, 1.0
          %v254 = vadd.f32 %v250, 1.0
          %v255 = vmul.f32 %v243, %v251
          %v256 = vmul.f32 %v244, %v252
          %v257 = vmul.f32 %v245, %v253
          %v258 = vmul.f32 %v246, %v254
          %v259 = vld [vmem:[%s2] sm:$0xff]
          %vm260 = vcmask 261120
          %v262 = vsel %vm260, %v259, 0
          %264 = vmatprep.subr.mxu0 0.0
          %265 = vmatpush1.msra.mxu0 %v255
          %266 = vmatprep.subr.mxu0 0.0
          %267 = vmatpush1.msra.mxu0 %v256
          %268 = vmatprep.subr.mxu0 0.0
          %269 = vmatpush1.msra.mxu0 %v257
          %270 = vmatprep.subr.mxu0 0.0
          %271 = vmatpush1.msra.mxu0 %v258
          %272 = vmatprep.subr.mxu0 0.0
          %273 = vmatpush1.msra.mxu0 0.0
          %274 = vmatprep.subr.mxu0 0.0
          %275 = vmatpush1.msra.mxu0 0.0
          %276 = vmatprep.subr.mxu0 0.0
          %277 = vmatpush1.msra.mxu0 0.0
          %278 = vmatprep.subr.mxu0 0.0
          %279 = vmatpush1.msra.mxu0 0.0
          %280 = vmatprep.subr.mxu0 0.0
          %281 = vmatpush1.msra.mxu0 0.0
          %282 = vmatprep.subr.mxu0 0.0
          %283 = vmatpush1.msra.mxu0 0.0
          %284 = vmatprep.subr.mxu0 0.0
          %285 = vmatpush1.msra.mxu0 0.0
          %286 = vmatprep.subr.mxu0 0.0
          %287 = vmatpush1.msra.mxu0 0.0
          %288 = vmatprep.subr.mxu0 0.0
          %289 = vmatpush1.msra.mxu0 0.0
          %290 = vmatprep.subr.mxu0 0.0
          %291 = vmatpush1.msra.mxu0 0.0
          %292 = vmatprep.subr.mxu0 0.0
          %293 = vmatpush1.msra.mxu0 0.0
          %294 = vmatprep.subr.mxu0 0.0
          %295 = vmatpush1.msra.mxu0 0.0
          %296 = vmatprep.subr.mxu0 0.0
          %297 = vmatpush1.msra.mxu0 0.0
          %298 = vmatprep.subr.mxu0 0.0
          %299 = vmatpush1.msra.mxu0 0.0
          %300 = vmatprep.subr.mxu0 0.0
          %301 = vmatpush1.msra.mxu0 0.0
          %302 = vmatprep.subr.mxu0 0.0
          %303 = vmatpush1.msra.mxu0 0.0
          %304 = vmatprep.subr.mxu0 0.0
          %305 = vmatpush1.msra.mxu0 0.0
          %306 = vmatprep.subr.mxu0 0.0
          %307 = vmatpush1.msra.mxu0 0.0
          %308 = vmatprep.subr.mxu0 0.0
          %309 = vmatpush1.msra.mxu0 0.0
          %310 = vmatprep.subr.mxu0 0.0
          %311 = vmatpush1.msra.mxu0 0.0
          %312 = vmatprep.subr.mxu0 0.0
          %313 = vmatpush1.msra.mxu0 0.0
          %314 = vmatprep.subr.mxu0 0.0
          %315 = vmatpush1.msra.mxu0 0.0
          %316 = vmatprep.subr.mxu0 0.0
          %317 = vmatpush1.msra.mxu0 0.0
          %318 = vmatprep.subr.mxu0 0.0
          %319 = vmatpush1.msra.mxu0 0.0
          %320 = vmatprep.subr.mxu0 0.0
          %321 = vmatpush1.msra.mxu0 0.0
          %322 = vmatprep.subr.mxu0 0.0
          %323 = vmatpush1.msra.mxu0 0.0
          %324 = vmatprep.subr.mxu0 0.0
          %325 = vmatpush1.msra.mxu0 0.0
          %326 = vmatprep.subr.mxu0 0.0
          %327 = vmatpush1.msra.mxu0 0.0
          %328 = vmatprep.mubr.f32.mxu0 0.0
          %329 = vmatmul.mubr.f32.gmra.mrb[0].mxu0 %v262
          %v330 = vpop.f32.mrb[0].mxu0
          %v331 = vadd.f32 0.0, %v330
          %v332 = vpop.f32.mrb[0].mxu0
          %333 = vdwg.mxu0
          %s334 = smul.u32 %s218, 4
          %s335 = scalar_lea.vmem %s193, %s334 [#allocation2]
          %vm336 = vcmask 519168
          %337 = vst.msk [vmem:[%s335] sm:$0xf] %vm336, %v331
          %v338 = vld [vmem:[%s204] sm:$0xff]
          %v339 = vld [vmem:[%s204 + $0x8] sm:$0xff]
          %v340 = vld [vmem:[%s204 + $0x10] sm:$0xff]
          %v341 = vld [vmem:[%s204 + $0x18] sm:$0xff]
          %342 = vset.pattern.permute.xlu0 1
          %343 = vperm.xlu0 %342, %v214
          %v344 = vpop.permute.xlu0 %343
          %346 = vset.pattern.permute.xlu0 1
          %347 = vperm.xlu0 %346, %v215
          %v348 = vpop.permute.xlu0 %347
          %350 = vset.pattern.permute.xlu0 1
          %351 = vperm.xlu0 %350, %v216
          %v352 = vpop.permute.xlu0 %351
          %354 = vset.pattern.permute.xlu0 1
          %355 = vperm.xlu0 %354, %v217
          %v356 = vpop.permute.xlu0 %355
          %v358 = vsub.f32 %v344, %v338
          %v359 = vsub.f32 %v348, %v339
          %v360 = vsub.f32 %v352, %v340
          %v361 = vsub.f32 %v356, %v341
          %v362 = verf.f32.pop %v358
          %v363 = verf.f32.pop %v359
          %v364 = verf.f32.pop %v360
          %v365 = verf.f32.pop %v361
          %v366 = vadd.f32 %v362, 1.0
          %v367 = vadd.f32 %v363, 1.0
          %v368 = vadd.f32 %v364, 1.0
          %v369 = vadd.f32 %v365, 1.0
          %v370 = vmul.f32 %v358, %v366
          %v371 = vmul.f32 %v359, %v367
          %v372 = vmul.f32 %v360, %v368
          %v373 = vmul.f32 %v361, %v369
          %v374 = vld [vmem:[%s2] sm:$0xff]
          %v376 = vsel %vm260, %v374, 0
          %378 = vmatprep.subr.mxu0 0.0
          %379 = vmatpush1.msra.mxu0 %v370
          %380 = vmatprep.subr.mxu0 0.0
          %381 = vmatpush1.msra.mxu0 %v371
          %382 = vmatprep.subr.mxu0 0.0
          %383 = vmatpush1.msra.mxu0 %v372
          %384 = vmatprep.subr.mxu0 0.0
          %385 = vmatpush1.msra.mxu0 %v373
          %386 = vmatprep.subr.mxu0 0.0
          %387 = vmatpush1.msra.mxu0 0.0
          %388 = vmatprep.subr.mxu0 0.0
          %389 = vmatpush1.msra.mxu0 0.0
          %390 = vmatprep.subr.mxu0 0.0
          %391 = vmatpush1.msra.mxu0 0.0
          %392 = vmatprep.subr.mxu0 0.0
          %393 = vmatpush1.msra.mxu0 0.0
          %394 = vmatprep.subr.mxu0 0.0
          %395 = vmatpush1.msra.mxu0 0.0
          %396 = vmatprep.subr.mxu0 0.0
          %397 = vmatpush1.msra.mxu0 0.0
          %398 = vmatprep.subr.mxu0 0.0
          %399 = vmatpush1.msra.mxu0 0.0
          %400 = vmatprep.subr.mxu0 0.0
          %401 = vmatpush1.msra.mxu0 0.0
          %402 = vmatprep.subr.mxu0 0.0
          %403 = vmatpush1.msra.mxu0 0.0
          %404 = vmatprep.subr.mxu0 0.0
          %405 = vmatpush1.msra.mxu0 0.0
          %406 = vmatprep.subr.mxu0 0.0
          %407 = vmatpush1.msra.mxu0 0.0
          %408 = vmatprep.subr.mxu0 0.0
          %409 = vmatpush1.msra.mxu0 0.0
          %410 = vmatprep.subr.mxu0 0.0
          %411 = vmatpush1.msra.mxu0 0.0
          %412 = vmatprep.subr.mxu0 0.0
          %413 = vmatpush1.msra.mxu0 0.0
          %414 = vmatprep.subr.mxu0 0.0
          %415 = vmatpush1.msra.mxu0 0.0
          %416 = vmatprep.subr.mxu0 0.0
          %417 = vmatpush1.msra.mxu0 0.0
          %418 = vmatprep.subr.mxu0 0.0
          %419 = vmatpush1.msra.mxu0 0.0
          %420 = vmatprep.subr.mxu0 0.0
          %421 = vmatpush1.msra.mxu0 0.0
          %422 = vmatprep.subr.mxu0 0.0
          %423 = vmatpush1.msra.mxu0 0.0
          %424 = vmatprep.subr.mxu0 0.0
          %425 = vmatpush1.msra.mxu0 0.0
          %426 = vmatprep.subr.mxu0 0.0
          %427 = vmatpush1.msra.mxu0 0.0
          %428 = vmatprep.subr.mxu0 0.0
          %429 = vmatpush1.msra.mxu0 0.0
          %430 = vmatprep.subr.mxu0 0.0
          %431 = vmatpush1.msra.mxu0 0.0
          %432 = vmatprep.subr.mxu0 0.0
          %433 = vmatpush1.msra.mxu0 0.0
          %434 = vmatprep.subr.mxu0 0.0
          %435 = vmatpush1.msra.mxu0 0.0
          %436 = vmatprep.subr.mxu0 0.0
          %437 = vmatpush1.msra.mxu0 0.0
          %438 = vmatprep.subr.mxu0 0.0
          %439 = vmatpush1.msra.mxu0 0.0
          %440 = vmatprep.subr.mxu0 0.0
          %441 = vmatpush1.msra.mxu0 0.0
          %442 = vmatprep.mubr.f32.mxu0 0.0
          %443 = vmatmul.mubr.f32.gmra.mrb[0].mxu0 %v376
          %v444 = vpop.f32.mrb[0].mxu0
          %v445 = vadd.f32 0.0, %v444
          %v446 = vpop.f32.mrb[0].mxu0
          %447 = vdwg.mxu0
          %s448 = sadd.s32 %s218, 1
          %s449 = smul.u32 %s448, 4
          %s450 = scalar_lea.vmem %s193, %s449 [#allocation2]
          %451 = vst.msk [vmem:[%s450] sm:$0xf] %vm336, %v445
          %v452 = vld [vmem:[%s204] sm:$0xff]
          %v453 = vld [vmem:[%s204 + $0x8] sm:$0xff]
          %v454 = vld [vmem:[%s204 + $0x10] sm:$0xff]
          %v455 = vld [vmem:[%s204 + $0x18] sm:$0xff]
          %456 = vset.pattern.permute.xlu0 2
          %457 = vperm.xlu0 %456, %v214
          %v458 = vpop.permute.xlu0 %457
          %460 = vset.pattern.permute.xlu0 2
          %461 = vperm.xlu0 %460, %v215
          %v462 = vpop.permute.xlu0 %461
          %464 = vset.pattern.permute.xlu0 2
          %465 = vperm.xlu0 %464, %v216
          %v466 = vpop.permute.xlu0 %465
          %468 = vset.pattern.permute.xlu0 2
          %469 = vperm.xlu0 %468, %v217
          %v470 = vpop.permute.xlu0 %469
          %v472 = vsub.f32 %v458, %v452
          %v473 = vsub.f32 %v462, %v453
          %v474 = vsub.f32 %v466, %v454
          %v475 = vsub.f32 %v470, %v455
          %v476 = verf.f32.pop %v472
          %v477 = verf.f32.pop %v473
          %v478 = verf.f32.pop %v474
          %v479 = verf.f32.pop %v475
          %v480 = vadd.f32 %v476, 1.0
          %v481 = vadd.f32 %v477, 1.0
          %v482 = vadd.f32 %v478, 1.0
          %v483 = vadd.f32 %v479, 1.0
          %v484 = vmul.f32 %v472, %v480
          %v485 = vmul.f32 %v473, %v481
          %v486 = vmul.f32 %v474, %v482
          %v487 = vmul.f32 %v475, %v483
          %v488 = vld [vmem:[%s2] sm:$0xff]
          %v490 = vsel %vm260, %v488, 0
          %492 = vmatprep.subr.mxu0 0.0
          %493 = vmatpush1.msra.mxu0 %v484
          %494 = vmatprep.subr.mxu0 0.0
          %495 = vmatpush1.msra.mxu0 %v485
          %496 = vmatprep.subr.mxu0 0.0
          %497 = vmatpush1.msra.mxu0 %v486
          %498 = vmatprep.subr.mxu0 0.0
          %499 = vmatpush1.msra.mxu0 %v487
          %500 = vmatprep.subr.mxu0 0.0
          %501 = vmatpush1.msra.mxu0 0.0
          %502 = vmatprep.subr.mxu0 0.0
          %503 = vmatpush1.msra.mxu0 0.0
          %504 = vmatprep.subr.mxu0 0.0
          %505 = vmatpush1.msra.mxu0 0.0
          %506 = vmatprep.subr.mxu0 0.0
          %507 = vmatpush1.msra.mxu0 0.0
          %508 = vmatprep.subr.mxu0 0.0
          %509 = vmatpush1.msra.mxu0 0.0
          %510 = vmatprep.subr.mxu0 0.0
          %511 = vmatpush1.msra.mxu0 0.0
          %512 = vmatprep.subr.mxu0 0.0
          %513 = vmatpush1.msra.mxu0 0.0
          %514 = vmatprep.subr.mxu0 0.0
          %515 = vmatpush1.msra.mxu0 0.0
          %516 = vmatprep.subr.mxu0 0.0
          %517 = vmatpush1.msra.mxu0 0.0
          %518 = vmatprep.subr.mxu0 0.0
          %519 = vmatpush1.msra.mxu0 0.0
          %520 = vmatprep.subr.mxu0 0.0
          %521 = vmatpush1.msra.mxu0 0.0
          %522 = vmatprep.subr.mxu0 0.0
          %523 = vmatpush1.msra.mxu0 0.0
          %524 = vmatprep.subr.mxu0 0.0
          %525 = vmatpush1.msra.mxu0 0.0
          %526 = vmatprep.subr.mxu0 0.0
          %527 = vmatpush1.msra.mxu0 0.0
          %528 = vmatprep.subr.mxu0 0.0
          %529 = vmatpush1.msra.mxu0 0.0
          %530 = vmatprep.subr.mxu0 0.0
          %531 = vmatpush1.msra.mxu0 0.0
          %532 = vmatprep.subr.mxu0 0.0
          %533 = vmatpush1.msra.mxu0 0.0
          %534 = vmatprep.subr.mxu0 0.0
          %535 = vmatpush1.msra.mxu0 0.0
          %536 = vmatprep.subr.mxu0 0.0
          %537 = vmatpush1.msra.mxu0 0.0
          %538 = vmatprep.subr.mxu0 0.0
          %539 = vmatpush1.msra.mxu0 0.0
          %540 = vmatprep.subr.mxu0 0.0
          %541 = vmatpush1.msra.mxu0 0.0
          %542 = vmatprep.subr.mxu0 0.0
          %543 = vmatpush1.msra.mxu0 0.0
          %544 = vmatprep.subr.mxu0 0.0
          %545 = vmatpush1.msra.mxu0 0.0
          %546 = vmatprep.subr.mxu0 0.0
          %547 = vmatpush1.msra.mxu0 0.0
          %548 = vmatprep.subr.mxu0 0.0
          %549 = vmatpush1.msra.mxu0 0.0
          %550 = vmatprep.subr.mxu0 0.0
          %551 = vmatpush1.msra.mxu0 0.0
          %552 = vmatprep.subr.mxu0 0.0
          %553 = vmatpush1.msra.mxu0 0.0
          %554 = vmatprep.subr.mxu0 0.0
          %555 = vmatpush1.msra.mxu0 0.0
          %556 = vmatprep.mubr.f32.mxu0 0.0
          %557 = vmatmul.mubr.f32.gmra.mrb[0].mxu0 %v490
          %v558 = vpop.f32.mrb[0].mxu0
          %v559 = vadd.f32 0.0, %v558
          %v560 = vpop.f32.mrb[0].mxu0
          %561 = vdwg.mxu0
          %s562 = sadd.s32 %s218, 2
          %s563 = smul.u32 %s562, 4
          %s564 = scalar_lea.vmem %s193, %s563 [#allocation2]
          %565 = vst.msk [vmem:[%s564] sm:$0xf] %vm336, %v559
          %v566 = vld [vmem:[%s204] sm:$0xff]
          %v567 = vld [vmem:[%s204 + $0x8] sm:$0xff]
          %v568 = vld [vmem:[%s204 + $0x10] sm:$0xff]
          %v569 = vld [vmem:[%s204 + $0x18] sm:$0xff]
          %570 = vset.pattern.permute.xlu0 3
          %571 = vperm.xlu0 %570, %v214
          %v572 = vpop.permute.xlu0 %571
          %574 = vset.pattern.permute.xlu0 3
          %575 = vperm.xlu0 %574, %v215
          %v576 = vpop.permute.xlu0 %575
          %578 = vset.pattern.permute.xlu0 3
          %579 = vperm.xlu0 %578, %v216
          %v580 = vpop.permute.xlu0 %579
          %582 = vset.pattern.permute.xlu0 3
          %583 = vperm.xlu0 %582, %v217
          %v584 = vpop.permute.xlu0 %583
          %v586 = vsub.f32 %v572, %v566
          %v587 = vsub.f32 %v576, %v567
          %v588 = vsub.f32 %v580, %v568
          %v589 = vsub.f32 %v584, %v569
          %v590 = verf.f32.pop %v586
          %v591 = verf.f32.pop %v587
          %v592 = verf.f32.pop %v588
          %v593 = verf.f32.pop %v589
          %v594 = vadd.f32 %v590, 1.0
          %v595 = vadd.f32 %v591, 1.0
          %v596 = vadd.f32 %v592, 1.0
          %v597 = vadd.f32 %v593, 1.0
          %v598 = vmul.f32 %v586, %v594
          %v599 = vmul.f32 %v587, %v595
          %v600 = vmul.f32 %v588, %v596
          %v601 = vmul.f32 %v589, %v597
          %v602 = vld [vmem:[%s2] sm:$0xff]
          %v604 = vsel %vm260, %v602, 0
          %606 = vmatprep.subr.mxu0 0.0
          %607 = vmatpush1.msra.mxu0 %v598
          %608 = vmatprep.subr.mxu0 0.0
          %609 = vmatpush1.msra.mxu0 %v599
          %610 = vmatprep.subr.mxu0 0.0
          %611 = vmatpush1.msra.mxu0 %v600
          %612 = vmatprep.subr.mxu0 0.0
          %613 = vmatpush1.msra.mxu0 %v601
          %614 = vmatprep.subr.mxu0 0.0
          %615 = vmatpush1.msra.mxu0 0.0
          %616 = vmatprep.subr.mxu0 0.0
          %617 = vmatpush1.msra.mxu0 0.0
          %618 = vmatprep.subr.mxu0 0.0
          %619 = vmatpush1.msra.mxu0 0.0
          %620 = vmatprep.subr.mxu0 0.0
          %621 = vmatpush1.msra.mxu0 0.0
          %622 = vmatprep.subr.mxu0 0.0
          %623 = vmatpush1.msra.mxu0 0.0
          %624 = vmatprep.subr.mxu0 0.0
          %625 = vmatpush1.msra.mxu0 0.0
          %626 = vmatprep.subr.mxu0 0.0
          %627 = vmatpush1.msra.mxu0 0.0
          %628 = vmatprep.subr.mxu0 0.0
          %629 = vmatpush1.msra.mxu0 0.0
          %630 = vmatprep.subr.mxu0 0.0
          %631 = vmatpush1.msra.mxu0 0.0
          %632 = vmatprep.subr.mxu0 0.0
          %633 = vmatpush1.msra.mxu0 0.0
          %634 = vmatprep.subr.mxu0 0.0
          %635 = vmatpush1.msra.mxu0 0.0
          %636 = vmatprep.subr.mxu0 0.0
          %637 = vmatpush1.msra.mxu0 0.0
          %638 = vmatprep.subr.mxu0 0.0
          %639 = vmatpush1.msra.mxu0 0.0
          %640 = vmatprep.subr.mxu0 0.0
          %641 = vmatpush1.msra.mxu0 0.0
          %642 = vmatprep.subr.mxu0 0.0
          %643 = vmatpush1.msra.mxu0 0.0
          %644 = vmatprep.subr.mxu0 0.0
          %645 = vmatpush1.msra.mxu0 0.0
          %646 = vmatprep.subr.mxu0 0.0
          %647 = vmatpush1.msra.mxu0 0.0
          %648 = vmatprep.subr.mxu0 0.0
          %649 = vmatpush1.msra.mxu0 0.0
          %650 = vmatprep.subr.mxu0 0.0
          %651 = vmatpush1.msra.mxu0 0.0
          %652 = vmatprep.subr.mxu0 0.0
          %653 = vmatpush1.msra.mxu0 0.0
          %654 = vmatprep.subr.mxu0 0.0
          %655 = vmatpush1.msra.mxu0 0.0
          %656 = vmatprep.subr.mxu0 0.0
          %657 = vmatpush1.msra.mxu0 0.0
          %658 = vmatprep.subr.mxu0 0.0
          %659 = vmatpush1.msra.mxu0 0.0
          %660 = vmatprep.subr.mxu0 0.0
          %661 = vmatpush1.msra.mxu0 0.0
          %662 = vmatprep.subr.mxu0 0.0
          %663 = vmatpush1.msra.mxu0 0.0
          %664 = vmatprep.subr.mxu0 0.0
          %665 = vmatpush1.msra.mxu0 0.0
          %666 = vmatprep.subr.mxu0 0.0
          %667 = vmatpush1.msra.mxu0 0.0
          %668 = vmatprep.subr.mxu0 0.0
          %669 = vmatpush1.msra.mxu0 0.0
          %670 = vmatprep.mubr.f32.mxu0 0.0
          %671 = vmatmul.mubr.f32.gmra.mrb[0].mxu0 %v604
          %v672 = vpop.f32.mrb[0].mxu0
          %v673 = vadd.f32 0.0, %v672
          %v674 = vpop.f32.mrb[0].mxu0
          %675 = vdwg.mxu0
          %s676 = sadd.s32 %s218, 3
          %s677 = smul.u32 %s676, 4
          %s678 = scalar_lea.vmem %s193, %s677 [#allocation2]
          %679 = vst.msk [vmem:[%s678] sm:$0xf] %vm336, %v673
          %v680 = vld [vmem:[%s204] sm:$0xff]
          %v681 = vld [vmem:[%s204 + $0x8] sm:$0xff]
          %v682 = vld [vmem:[%s204 + $0x10] sm:$0xff]
          %v683 = vld [vmem:[%s204 + $0x18] sm:$0xff]
          %684 = vset.pattern.permute.xlu0 4
          %685 = vperm.xlu0 %684, %v214
          %v686 = vpop.permute.xlu0 %685
          %688 = vset.pattern.permute.xlu0 4
          %689 = vperm.xlu0 %688, %v215
          %v690 = vpop.permute.xlu0 %689
          %692 = vset.pattern.permute.xlu0 4
          %693 = vperm.xlu0 %692, %v216
          %v694 = vpop.permute.xlu0 %693
          %696 = vset.pattern.permute.xlu0 4
          %697 = vperm.xlu0 %696, %v217
          %v698 = vpop.permute.xlu0 %697
          %v700 = vsub.f32 %v686, %v680
          %v701 = vsub.f32 %v690, %v681
          %v702 = vsub.f32 %v694, %v682
          %v703 = vsub.f32 %v698, %v683
          %v704 = verf.f32.pop %v700
          %v705 = verf.f32.pop %v701
          %v706 = verf.f32.pop %v702
          %v707 = verf.f32.pop %v703
          %v708 = vadd.f32 %v704, 1.0
          %v709 = vadd.f32 %v705, 1.0
          %v710 = vadd.f32 %v706, 1.0
          %v711 = vadd.f32 %v707, 1.0
          %v712 = vmul.f32 %v700, %v708
          %v713 = vmul.f32 %v701, %v709
          %v714 = vmul.f32 %v702, %v710
          %v715 = vmul.f32 %v703, %v711
          %v716 = vld [vmem:[%s2] sm:$0xff]
          %v718 = vsel %vm260, %v716, 0
          %720 = vmatprep.subr.mxu0 0.0
          %721 = vmatpush1.msra.mxu0 %v712
          %722 = vmatprep.subr.mxu0 0.0
          %723 = vmatpush1.msra.mxu0 %v713
          %724 = vmatprep.subr.mxu0 0.0
          %725 = vmatpush1.msra.mxu0 %v714
          %726 = vmatprep.subr.mxu0 0.0
          %727 = vmatpush1.msra.mxu0 %v715
          %728 = vmatprep.subr.mxu0 0.0
          %729 = vmatpush1.msra.mxu0 0.0
          %730 = vmatprep.subr.mxu0 0.0
          %731 = vmatpush1.msra.mxu0 0.0
          %732 = vmatprep.subr.mxu0 0.0
          %733 = vmatpush1.msra.mxu0 0.0
          %734 = vmatprep.subr.mxu0 0.0
          %735 = vmatpush1.msra.mxu0 0.0
          %736 = vmatprep.subr.mxu0 0.0
          %737 = vmatpush1.msra.mxu0 0.0
          %738 = vmatprep.subr.mxu0 0.0
          %739 = vmatpush1.msra.mxu0 0.0
          %740 = vmatprep.subr.mxu0 0.0
          %741 = vmatpush1.msra.mxu0 0.0
          %742 = vmatprep.subr.mxu0 0.0
          %743 = vmatpush1.msra.mxu0 0.0
          %744 = vmatprep.subr.mxu0 0.0
          %745 = vmatpush1.msra.mxu0 0.0
          %746 = vmatprep.subr.mxu0 0.0
          %747 = vmatpush1.msra.mxu0 0.0
          %748 = vmatprep.subr.mxu0 0.0
          %749 = vmatpush1.msra.mxu0 0.0
          %750 = vmatprep.subr.mxu0 0.0
          %751 = vmatpush1.msra.mxu0 0.0
          %752 = vmatprep.subr.mxu0 0.0
          %753 = vmatpush1.msra.mxu0 0.0
          %754 = vmatprep.subr.mxu0 0.0
          %755 = vmatpush1.msra.mxu0 0.0
          %756 = vmatprep.subr.mxu0 0.0
          %757 = vmatpush1.msra.mxu0 0.0
          %758 = vmatprep.subr.mxu0 0.0
          %759 = vmatpush1.msra.mxu0 0.0
          %760 = vmatprep.subr.mxu0 0.0
          %761 = vmatpush1.msra.mxu0 0.0
          %762 = vmatprep.subr.mxu0 0.0
          %763 = vmatpush1.msra.mxu0 0.0
          %764 = vmatprep.subr.mxu0 0.0
          %765 = vmatpush1.msra.mxu0 0.0
          %766 = vmatprep.subr.mxu0 0.0
          %767 = vmatpush1.msra.mxu0 0.0
          %768 = vmatprep.subr.mxu0 0.0
          %769 = vmatpush1.msra.mxu0 0.0
          %770 = vmatprep.subr.mxu0 0.0
          %771 = vmatpush1.msra.mxu0 0.0
          %772 = vmatprep.subr.mxu0 0.0
          %773 = vmatpush1.msra.mxu0 0.0
          %774 = vmatprep.subr.mxu0 0.0
          %775 = vmatpush1.msra.mxu0 0.0
          %776 = vmatprep.subr.mxu0 0.0
          %777 = vmatpush1.msra.mxu0 0.0
          %778 = vmatprep.subr.mxu0 0.0
          %779 = vmatpush1.msra.mxu0 0.0
          %780 = vmatprep.subr.mxu0 0.0
          %781 = vmatpush1.msra.mxu0 0.0
          %782 = vmatprep.subr.mxu0 0.0
          %783 = vmatpush1.msra.mxu0 0.0
          %784 = vmatprep.mubr.f32.mxu0 0.0
          %785 = vmatmul.mubr.f32.gmra.mrb[0].mxu0 %v718
          %v786 = vpop.f32.mrb[0].mxu0
          %v787 = vadd.f32 0.0, %v786
          %v788 = vpop.f32.mrb[0].mxu0
          %789 = vdwg.mxu0
          %s790 = sadd.s32 %s218, 4
          %s791 = smul.u32 %s790, 4
          %s792 = scalar_lea.vmem %s193, %s791 [#allocation2]
          %793 = vst.msk [vmem:[%s792] sm:$0xf] %vm336, %v787
          %v794 = vld [vmem:[%s204] sm:$0xff]
          %v795 = vld [vmem:[%s204 + $0x8] sm:$0xff]
          %v796 = vld [vmem:[%s204 + $0x10] sm:$0xff]
          %v797 = vld [vmem:[%s204 + $0x18] sm:$0xff]
          %798 = vset.pattern.permute.xlu0 5
          %799 = vperm.xlu0 %798, %v214
          %v800 = vpop.permute.xlu0 %799
          %802 = vset.pattern.permute.xlu0 5
          %803 = vperm.xlu0 %802, %v215
          %v804 = vpop.permute.xlu0 %803
          %806 = vset.pattern.permute.xlu0 5
          %807 = vperm.xlu0 %806, %v216
          %v808 = vpop.permute.xlu0 %807
          %810 = vset.pattern.permute.xlu0 5
          %811 = vperm.xlu0 %810, %v217
          %v812 = vpop.permute.xlu0 %811
          %v814 = vsub.f32 %v800, %v794
          %v815 = vsub.f32 %v804, %v795
          %v816 = vsub.f32 %v808, %v796
          %v817 = vsub.f32 %v812, %v797
          %v818 = verf.f32.pop %v814
          %v819 = verf.f32.pop %v815
          %v820 = verf.f32.pop %v816
          %v821 = verf.f32.pop %v817
          %v822 = vadd.f32 %v818, 1.0
          %v823 = vadd.f32 %v819, 1.0
          %v824 = vadd.f32 %v820, 1.0
          %v825 = vadd.f32 %v821, 1.0
          %v826 = vmul.f32 %v814, %v822
          %v827 = vmul.f32 %v815, %v823
          %v828 = vmul.f32 %v816, %v824
          %v829 = vmul.f32 %v817, %v825
          %v830 = vld [vmem:[%s2] sm:$0xff]
          %v832 = vsel %vm260, %v830, 0
          %834 = vmatprep.subr.mxu0 0.0
          %835 = vmatpush1.msra.mxu0 %v826
          %836 = vmatprep.subr.mxu0 0.0
          %837 = vmatpush1.msra.mxu0 %v827
          %838 = vmatprep.subr.mxu0 0.0
          %839 = vmatpush1.msra.mxu0 %v828
          %840 = vmatprep.subr.mxu0 0.0
          %841 = vmatpush1.msra.mxu0 %v829
          %842 = vmatprep.subr.mxu0 0.0
          %843 = vmatpush1.msra.mxu0 0.0
          %844 = vmatprep.subr.mxu0 0.0
          %845 = vmatpush1.msra.mxu0 0.0
          %846 = vmatprep.subr.mxu0 0.0
          %847 = vmatpush1.msra.mxu0 0.0
          %848 = vmatprep.subr.mxu0 0.0
          %849 = vmatpush1.msra.mxu0 0.0
          %850 = vmatprep.subr.mxu0 0.0
          %851 = vmatpush1.msra.mxu0 0.0
          %852 = vmatprep.subr.mxu0 0.0
          %853 = vmatpush1.msra.mxu0 0.0
          %854 = vmatprep.subr.mxu0 0.0
          %855 = vmatpush1.msra.mxu0 0.0
          %856 = vmatprep.subr.mxu0 0.0
          %857 = vmatpush1.msra.mxu0 0.0
          %858 = vmatprep.subr.mxu0 0.0
          %859 = vmatpush1.msra.mxu0 0.0
          %860 = vmatprep.subr.mxu0 0.0
          %861 = vmatpush1.msra.mxu0 0.0
          %862 = vmatprep.subr.mxu0 0.0
          %863 = vmatpush1.msra.mxu0 0.0
          %864 = vmatprep.subr.mxu0 0.0
          %865 = vmatpush1.msra.mxu0 0.0
          %866 = vmatprep.subr.mxu0 0.0
          %867 = vmatpush1.msra.mxu0 0.0
          %868 = vmatprep.subr.mxu0 0.0
          %869 = vmatpush1.msra.mxu0 0.0
          %870 = vmatprep.subr.mxu0 0.0
          %871 = vmatpush1.msra.mxu0 0.0
          %872 = vmatprep.subr.mxu0 0.0
          %873 = vmatpush1.msra.mxu0 0.0
          %874 = vmatprep.subr.mxu0 0.0
          %875 = vmatpush1.msra.mxu0 0.0
          %876 = vmatprep.subr.mxu0 0.0
          %877 = vmatpush1.msra.mxu0 0.0
          %878 = vmatprep.subr.mxu0 0.0
          %879 = vmatpush1.msra.mxu0 0.0
          %880 = vmatprep.subr.mxu0 0.0
          %881 = vmatpush1.msra.mxu0 0.0
          %882 = vmatprep.subr.mxu0 0.0
          %883 = vmatpush1.msra.mxu0 0.0
          %884 = vmatprep.subr.mxu0 0.0
          %885 = vmatpush1.msra.mxu0 0.0
          %886 = vmatprep.subr.mxu0 0.0
          %887 = vmatpush1.msra.mxu0 0.0
          %888 = vmatprep.subr.mxu0 0.0
          %889 = vmatpush1.msra.mxu0 0.0
          %890 = vmatprep.subr.mxu0 0.0
          %891 = vmatpush1.msra.mxu0 0.0
          %892 = vmatprep.subr.mxu0 0.0
          %893 = vmatpush1.msra.mxu0 0.0
          %894 = vmatprep.subr.mxu0 0.0
          %895 = vmatpush1.msra.mxu0 0.0
          %896 = vmatprep.subr.mxu0 0.0
          %897 = vmatpush1.msra.mxu0 0.0
          %898 = vmatprep.mubr.f32.mxu0 0.0
          %899 = vmatmul.mubr.f32.gmra.mrb[0].mxu0 %v832
          %v900 = vpop.f32.mrb[0].mxu0
          %v901 = vadd.f32 0.0, %v900
          %v902 = vpop.f32.mrb[0].mxu0
          %903 = vdwg.mxu0
          %s904 = sadd.s32 %s218, 5
          %s905 = smul.u32 %s904, 4
          %s906 = scalar_lea.vmem %s193, %s905 [#allocation2]
          %907 = vst.msk [vmem:[%s906] sm:$0xf] %vm336, %v901
          %v908 = vld [vmem:[%s204] sm:$0xff]
          %v909 = vld [vmem:[%s204 + $0x8] sm:$0xff]
          %v910 = vld [vmem:[%s204 + $0x10] sm:$0xff]
          %v911 = vld [vmem:[%s204 + $0x18] sm:$0xff]
          %912 = vset.pattern.permute.xlu0 6
          %913 = vperm.xlu0 %912, %v214
          %v914 = vpop.permute.xlu0 %913
          %916 = vset.pattern.permute.xlu0 6
          %917 = vperm.xlu0 %916, %v215
          %v918 = vpop.permute.xlu0 %917
          %920 = vset.pattern.permute.xlu0 6
          %921 = vperm.xlu0 %920, %v216
          %v922 = vpop.permute.xlu0 %921
          %924 = vset.pattern.permute.xlu0 6
          %925 = vperm.xlu0 %924, %v217
          %v926 = vpop.permute.xlu0 %925
          %v928 = vsub.f32 %v914, %v908
          %v929 = vsub.f32 %v918, %v909
          %v930 = vsub.f32 %v922, %v910
          %v931 = vsub.f32 %v926, %v911
          %v932 = verf.f32.pop %v928
          %v933 = verf.f32.pop %v929
          %v934 = verf.f32.pop %v930
          %v935 = verf.f32.pop %v931
          %v936 = vadd.f32 %v932, 1.0
          %v937 = vadd.f32 %v933, 1.0
          %v938 = vadd.f32 %v934, 1.0
          %v939 = vadd.f32 %v935, 1.0
          %v940 = vmul.f32 %v928, %v936
          %v941 = vmul.f32 %v929, %v937
          %v942 = vmul.f32 %v930, %v938
          %v943 = vmul.f32 %v931, %v939
          %v944 = vld [vmem:[%s2] sm:$0xff]
          %v946 = vsel %vm260, %v944, 0
          %948 = vmatprep.subr.mxu0 0.0
          %949 = vmatpush1.msra.mxu0 %v940
          %950 = vmatprep.subr.mxu0 0.0
          %951 = vmatpush1.msra.mxu0 %v941
          %952 = vmatprep.subr.mxu0 0.0
          %953 = vmatpush1.msra.mxu0 %v942
          %954 = vmatprep.subr.mxu0 0.0
          %955 = vmatpush1.msra.mxu0 %v943
          %956 = vmatprep.subr.mxu0 0.0
          %957 = vmatpush1.msra.mxu0 0.0
          %958 = vmatprep.subr.mxu0 0.0
          %959 = vmatpush1.msra.mxu0 0.0
          %960 = vmatprep.subr.mxu0 0.0
          %961 = vmatpush1.msra.mxu0 0.0
          %962 = vmatprep.subr.mxu0 0.0
          %963 = vmatpush1.msra.mxu0 0.0
          %964 = vmatprep.subr.mxu0 0.0
          %965 = vmatpush1.msra.mxu0 0.0
          %966 = vmatprep.subr.mxu0 0.0
          %967 = vmatpush1.msra.mxu0 0.0
          %968 = vmatprep.subr.mxu0 0.0
          %969 = vmatpush1.msra.mxu0 0.0
          %970 = vmatprep.subr.mxu0 0.0
          %971 = vmatpush1.msra.mxu0 0.0
          %972 = vmatprep.subr.mxu0 0.0
          %973 = vmatpush1.msra.mxu0 0.0
          %974 = vmatprep.subr.mxu0 0.0
          %975 = vmatpush1.msra.mxu0 0.0
          %976 = vmatprep.subr.mxu0 0.0
          %977 = vmatpush1.msra.mxu0 0.0
          %978 = vmatprep.subr.mxu0 0.0
          %979 = vmatpush1.msra.mxu0 0.0
          %980 = vmatprep.subr.mxu0 0.0
          %981 = vmatpush1.msra.mxu0 0.0
          %982 = vmatprep.subr.mxu0 0.0
          %983 = vmatpush1.msra.mxu0 0.0
          %984 = vmatprep.subr.mxu0 0.0
          %985 = vmatpush1.msra.mxu0 0.0
          %986 = vmatprep.subr.mxu0 0.0
          %987 = vmatpush1.msra.mxu0 0.0
          %988 = vmatprep.subr.mxu0 0.0
          %989 = vmatpush1.msra.mxu0 0.0
          %990 = vmatprep.subr.mxu0 0.0
          %991 = vmatpush1.msra.mxu0 0.0
          %992 = vmatprep.subr.mxu0 0.0
          %993 = vmatpush1.msra.mxu0 0.0
          %994 = vmatprep.subr.mxu0 0.0
          %995 = vmatpush1.msra.mxu0 0.0
          %996 = vmatprep.subr.mxu0 0.0
          %997 = vmatpush1.msra.mxu0 0.0
          %998 = vmatprep.subr.mxu0 0.0
          %999 = vmatpush1.msra.mxu0 0.0
          %1000 = vmatprep.subr.mxu0 0.0
          %1001 = vmatpush1.msra.mxu0 0.0
          %1002 = vmatprep.subr.mxu0 0.0
          %1003 = vmatpush1.msra.mxu0 0.0
          %1004 = vmatprep.subr.mxu0 0.0
          %1005 = vmatpush1.msra.mxu0 0.0
          %1006 = vmatprep.subr.mxu0 0.0
          %1007 = vmatpush1.msra.mxu0 0.0
          %1008 = vmatprep.subr.mxu0 0.0
          %1009 = vmatpush1.msra.mxu0 0.0
          %1010 = vmatprep.subr.mxu0 0.0
          %1011 = vmatpush1.msra.mxu0 0.0
          %1012 = vmatprep.mubr.f32.mxu0 0.0
          %1013 = vmatmul.mubr.f32.gmra.mrb[0].mxu0 %v946
          %v1014 = vpop.f32.mrb[0].mxu0
          %v1015 = vadd.f32 0.0, %v1014
          %v1016 = vpop.f32.mrb[0].mxu0
          %1017 = vdwg.mxu0
          %s1018 = sadd.s32 %s218, 6
          %s1019 = smul.u32 %s1018, 4
          %s1020 = scalar_lea.vmem %s193, %s1019 [#allocation2]
          %1021 = vst.msk [vmem:[%s1020] sm:$0xf] %vm336, %v1015
          %v1022 = vld [vmem:[%s204] sm:$0xff]
          %v1023 = vld [vmem:[%s204 + $0x8] sm:$0xff]
          %v1024 = vld [vmem:[%s204 + $0x10] sm:$0xff]
          %v1025 = vld [vmem:[%s204 + $0x18] sm:$0xff]
          %1026 = vset.pattern.permute.xlu0 7
          %1027 = vperm.xlu0 %1026, %v214
          %v1028 = vpop.permute.xlu0 %1027
          %1030 = vset.pattern.permute.xlu0 7
          %1031 = vperm.xlu0 %1030, %v215
          %v1032 = vpop.permute.xlu0 %1031
          %1034 = vset.pattern.permute.xlu0 7
          %1035 = vperm.xlu0 %1034, %v216
          %v1036 = vpop.permute.xlu0 %1035
          %1038 = vset.pattern.permute.xlu0 7
          %1039 = vperm.xlu0 %1038, %v217
          %v1040 = vpop.permute.xlu0 %1039
          %v1042 = vsub.f32 %v1028, %v1022
          %v1043 = vsub.f32 %v1032, %v1023
          %v1044 = vsub.f32 %v1036, %v1024
          %v1045 = vsub.f32 %v1040, %v1025
          %v1046 = verf.f32.pop %v1042
          %v1047 = verf.f32.pop %v1043
          %v1048 = verf.f32.pop %v1044
          %v1049 = verf.f32.pop %v1045
          %v1050 = vadd.f32 %v1046, 1.0
          %v1051 = vadd.f32 %v1047, 1.0
          %v1052 = vadd.f32 %v1048, 1.0
          %v1053 = vadd.f32 %v1049, 1.0
          %v1054 = vmul.f32 %v1042, %v1050
          %v1055 = vmul.f32 %v1043, %v1051
          %v1056 = vmul.f32 %v1044, %v1052
          %v1057 = vmul.f32 %v1045, %v1053
          %v1058 = vld [vmem:[%s2] sm:$0xff]
          %v1060 = vsel %vm260, %v1058, 0
          %1062 = vmatprep.subr.mxu0 0.0
          %1063 = vmatpush1.msra.mxu0 %v1054
          %1064 = vmatprep.subr.mxu0 0.0
          %1065 = vmatpush1.msra.mxu0 %v1055
          %1066 = vmatprep.subr.mxu0 0.0
          %1067 = vmatpush1.msra.mxu0 %v1056
          %1068 = vmatprep.subr.mxu0 0.0
          %1069 = vmatpush1.msra.mxu0 %v1057
          %1070 = vmatprep.subr.mxu0 0.0
          %1071 = vmatpush1.msra.mxu0 0.0
          %1072 = vmatprep.subr.mxu0 0.0
          %1073 = vmatpush1.msra.mxu0 0.0
          %1074 = vmatprep.subr.mxu0 0.0
          %1075 = vmatpush1.msra.mxu0 0.0
          %1076 = vmatprep.subr.mxu0 0.0
          %1077 = vmatpush1.msra.mxu0 0.0
          %1078 = vmatprep.subr.mxu0 0.0
          %1079 = vmatpush1.msra.mxu0 0.0
          %1080 = vmatprep.subr.mxu0 0.0
          %1081 = vmatpush1.msra.mxu0 0.0
          %1082 = vmatprep.subr.mxu0 0.0
          %1083 = vmatpush1.msra.mxu0 0.0
          %1084 = vmatprep.subr.mxu0 0.0
          %1085 = vmatpush1.msra.mxu0 0.0
          %1086 = vmatprep.subr.mxu0 0.0
          %1087 = vmatpush1.msra.mxu0 0.0
          %1088 = vmatprep.subr.mxu0 0.0
          %1089 = vmatpush1.msra.mxu0 0.0
          %1090 = vmatprep.subr.mxu0 0.0
          %1091 = vmatpush1.msra.mxu0 0.0
          %1092 = vmatprep.subr.mxu0 0.0
          %1093 = vmatpush1.msra.mxu0 0.0
          %1094 = vmatprep.subr.mxu0 0.0
          %1095 = vmatpush1.msra.mxu0 0.0
          %1096 = vmatprep.subr.mxu0 0.0
          %1097 = vmatpush1.msra.mxu0 0.0
          %1098 = vmatprep.subr.mxu0 0.0
          %1099 = vmatpush1.msra.mxu0 0.0
          %1100 = vmatprep.subr.mxu0 0.0
          %1101 = vmatpush1.msra.mxu0 0.0
          %1102 = vmatprep.subr.mxu0 0.0
          %1103 = vmatpush1.msra.mxu0 0.0
          %1104 = vmatprep.subr.mxu0 0.0
          %1105 = vmatpush1.msra.mxu0 0.0
          %1106 = vmatprep.subr.mxu0 0.0
          %1107 = vmatpush1.msra.mxu0 0.0
          %1108 = vmatprep.subr.mxu0 0.0
          %1109 = vmatpush1.msra.mxu0 0.0
          %1110 = vmatprep.subr.mxu0 0.0
          %1111 = vmatpush1.msra.mxu0 0.0
          %1112 = vmatprep.subr.mxu0 0.0
          %1113 = vmatpush1.msra.mxu0 0.0
          %1114 = vmatprep.subr.mxu0 0.0
          %1115 = vmatpush1.msra.mxu0 0.0
          %1116 = vmatprep.subr.mxu0 0.0
          %1117 = vmatpush1.msra.mxu0 0.0
          %1118 = vmatprep.subr.mxu0 0.0
          %1119 = vmatpush1.msra.mxu0 0.0
          %1120 = vmatprep.subr.mxu0 0.0
          %1121 = vmatpush1.msra.mxu0 0.0
          %1122 = vmatprep.subr.mxu0 0.0
          %1123 = vmatpush1.msra.mxu0 0.0
          %1124 = vmatprep.subr.mxu0 0.0
          %1125 = vmatpush1.msra.mxu0 0.0
          %1126 = vmatprep.mubr.f32.mxu0 0.0
          %1127 = vmatmul.mubr.f32.gmra.mrb[0].mxu0 %v1060
          %v1128 = vpop.f32.mrb[0].mxu0
          %v1129 = vadd.f32 0.0, %v1128
          %v1130 = vpop.f32.mrb[0].mxu0
          %1131 = vdwg.mxu0
          %s1132 = sadd.s32 %s218, 7
          %s1133 = smul.u32 %s1132, 4
          %s1134 = scalar_lea.vmem %s193, %s1133 [#allocation2]
          %1135 = vst.msk [vmem:[%s1134] sm:$0xf] %vm336, %v1129
        $region37: #{tpu_custom_call.1} parent=31 // loop_footer
          %s211 = sadd.s32 1, %s207
        $region38: #{tpu_custom_call.1} parent=31 // loop_footer_branch
          %206 = sbr.rel target = $region34
        $region39: #{tpu_custom_call.1} parent=31 // loop_exit
          _
        %s1136 = sand.u32 %s112, 1
        %s1137 = scalar_lea.sflag [#allocation3], %s1136
        %s1138 = sand.u32 %s112, 1
        %s1139 = smul.addr %s1138, 128
        %s1140 = scalar_lea.vmem [#allocation2], %s1139
        // Predicated region
        $region40: #{tpu_custom_call.1} parent=31 // pred_check
          %p1141 = pneg %p122
        $region41: #{tpu_custom_call.1} parent=31 // pred_check_branch
          %1143 = sbr.rel (%p1141) target = $region43
        $region42: #{tpu_custom_call.1} parent=31 // pred_region
          %s1144 = smul.u32 32, %s21
          %s1146 = ssub.s32 2048, 2048
          %1147 = vsyncadd %s1137, %s1146
          %s1148 = sadd.s32 %s22, %s1144
          %s1149 = smul.addr %s1148, 64
          %s1150 = scalar_lea.hbm %s3, %s1149
          %s1151 = sshll.u32 %s1140, 4
          %s1152 = int_to_ptr.vmem [resolvable:$true] %s1151
          %1157 = dma.vmem_to_hbm [thread:$0]  %s1152, 2048, %s1150, %s1137, 64, 64, 4
        $region43: #{tpu_custom_call.1} parent=31 // pred_fallthru
          _
      $region32: #{tpu_custom_call.1} parent=5 // pred_fallthru
        _
      %p1158 = scmp.le.s32.totalorder 2, %s12
      // Predicated region
      $region44: #{tpu_custom_call.1} parent=5 // pred_check
        %p1159 = pneg %p1158
      $region45: #{tpu_custom_call.1} parent=5 // pred_check_branch
        %1161 = sbr.rel (%p1159) target = $region47
      $region46: #{tpu_custom_call.1} parent=5 // pred_region
        %s1162 = ssub.s32 %s12, 2
        // Predicated region
        $region48: #{tpu_custom_call.1} parent=46 // pred_check
          %p1163 = pneg %p128
        $region49: #{tpu_custom_call.1} parent=46 // pred_check_branch
          %1165 = sbr.rel (%p1163) target = $region51
        $region50: #{tpu_custom_call.1} parent=46 // pred_region
          %s1166 = sand.u32 %s113, 1
          %s1167 = scalar_lea.sflag [#allocation3], %s1166
          %s1168 = sand.u32 %s113, 1
          %s1169 = smul.addr %s1168, 128
          %s1170 = scalar_lea.vmem [#allocation2], %s1169
          %1171 = dma.done %s1167, 2048
        $region51: #{tpu_custom_call.1} parent=46 // pred_fallthru
          _
      $region47: #{tpu_custom_call.1} parent=5 // pred_fallthru
        _
    $region6: #{tpu_custom_call.1} parent=1 // loop_footer
      %s16 = sadd.s32 1, %s12
    $region7: #{tpu_custom_call.1} parent=1 // loop_footer_branch
      %11 = sbr.rel target = $region3
    $region8: #{tpu_custom_call.1} parent=1 // loop_exit
      _
    %1172 = vsyncpa [#allocation3], 1
    %s1173 = scalar_lea.sflag [#allocation3], 1
    %1174 = vsyncpa %s1173, 1

</llo_original>
